<compile_context>
chip_gen: v6e
topology: v6e:2x2x1
jax: 0.10.0
libtpu: 0.0.40
codegen_flags: <defaults>
</compile_context>

<pallas_src>
import functools

import jax
import jax.numpy as jnp
import numpy as np
from jax import lax
from jax.experimental import pallas as pl
from jax.experimental.pallas import tpu as pltpu

EPS = 1e-5  # nn.BatchNorm2d default


# ----------------------------------------------------------------------------
# Hardware queries (safe fallbacks)
# ----------------------------------------------------------------------------
def _device_kind():
    try:
        return jax.devices()[0].device_kind.lower()
    except Exception:
        return ""


def _vmem_budget_bytes(kind):
    try:
        cap = int(pltpu.get_tpu_info().vmem_capacity_bytes)
    except Exception:
        cap = (64 << 20) if "v7" in kind else (128 << 20)
    # 85% of physical VMEM (headroom for Mosaic internal scratch), <= 100 MiB.
    return min(int(0.85 * cap), 100 << 20)


def _num_tensorcores(kind):
    return 2 if "v7" in kind else 1


# ----------------------------------------------------------------------------
# Kernel 1: 3x3 conv (bf16 MXU, f32 acc) + per-Cout-channel sum / sum-of-squares
# ----------------------------------------------------------------------------
def conv_stats_kernel(x_ref, w_ref, out_ref, sum_ref, sqsum_ref,
                      sum_sc, sqsum_sc, *, W, HW_real, per_tap):
    # x_ref:   (1, Cin, HWp)  bf16   flattened-spatial input plane (shared across c)
    # w_ref:   (ct, 9*Cin)    bf16   this Cout tile's weights
    # out_ref: (1, ct, HWp)   bf16   conv output (pre-BN)
    # sum_ref, sqsum_ref: (ct, 1) f32 running batch totals (last write wins)
    # sum_sc, sqsum_sc:   (CT, ct, 1) f32 persistent accumulators
    n = pl.program_id(0)
    c = pl.program_id(1)

    Cin = x_ref.shape[1]
    HW = x_ref.shape[2]                       # lane-padded flattened spatial size
    P = W + 1                                 # flat zero halo covering +-(W+1) shifts

    x = x_ref[0]                              # (Cin, HW) bf16
    zpad = jnp.zeros((Cin, P), x.dtype)
    xpad = jnp.concatenate([zpad, x, zpad], axis=1)   # (Cin, HW + 2*(W+1))

    col = lax.broadcasted_iota(jnp.int32, (1, HW), 1) % W
    lkeep = (col != 0).astype(x.dtype)        # kill horizontal wrap for ox = -1 taps
    rkeep = (col != W - 1).astype(x.dtype)    # kill horizontal wrap for ox = +1 taps

    # Tap (oy, ox) at flat output position s reads flat input position s + oy*W + ox.
    # Vertical out-of-bounds lands in the zero halo / zero pad; horizontal
    # wrap-around is killed by the edge masks.
    def tap(oy, ox):
        k = oy * W + ox
        t = xpad[:, P + k:P + k + HW]         # (Cin, HW), static lane slice
        if ox == -1:
            t = t * lkeep
        elif ox == 1:
            t = t * rkeep
        return t

    offs = [(oy, ox) for oy in (-1, 0, 1) for ox in (-1, 0, 1)]
    if per_tap:
        # Large Cin: 9 accumulating MXU pushes; avoids the (9*Cin, HW) concat temp.
        acc = jnp.zeros((w_ref.shape[0], HW), jnp.float32)
        for idx, (oy, ox) in enumerate(offs):
            w_tap = w_ref[:, idx * Cin:(idx + 1) * Cin]
            acc = acc + jnp.dot(w_tap, tap(oy, ox),
                                preferred_element_type=jnp.float32)
    else:
        # Small Cin: single MXU contraction with K = 9*Cin.
        patches = jnp.concatenate([tap(oy, ox) for (oy, ox) in offs], axis=0)
        acc = jnp.dot(w_ref[...], patches, preferred_element_type=jnp.float32)

    out_ref[0] = acc.astype(out_ref.dtype)    # lane-dense bf16 store

    acc_s = acc
    if HW_real != HW:                         # exclude lane padding from the stats
        flat = lax.broadcasted_iota(jnp.int32, (1, HW), 1)
        acc_s = acc * (flat < HW_real).astype(jnp.float32)

    @pl.when(n == 0)
    def _():
        sum_sc[c] = jnp.zeros(sum_sc.shape[1:], sum_sc.dtype)
        sqsum_sc[c] = jnp.zeros(sqsum_sc.shape[1:], sqsum_sc.dtype)

    sum_sc[c] = sum_sc[c] + jnp.sum(acc_s, axis=1, keepdims=True)
    sqsum_sc[c] = sqsum_sc[c] + jnp.sum(acc_s * acc_s, axis=1, keepdims=True)
    # Running totals written every step; the last visit (n == N-1) leaves the
    # full-batch sums in HBM.  (ct, 1) blocks -> negligible traffic.
    sum_ref[...] = sum_sc[c]
    sqsum_ref[...] = sqsum_sc[c]


# ----------------------------------------------------------------------------
# Kernel 2: per-channel FMA (precomputed BN scale/shift) + ReLU
# ----------------------------------------------------------------------------
def bn_relu_kernel(y_ref, scale_ref, shift_ref, out_ref):
    # y_ref: (Nb, ct, HWp) bf16; scale/shift: (ct, 1) f32 broadcast over lanes/batch
    y = y_ref[...].astype(jnp.float32) * scale_ref[...] + shift_ref[...]
    out_ref[...] = jnp.maximum(y, 0.0).astype(out_ref.dtype)


# ----------------------------------------------------------------------------
# Wrapper
# ----------------------------------------------------------------------------
def conv3_relu(x_nchw, weight, gamma, beta):
    """x_nchw: (N, Cin, H, W); weight: (Cout, Cin, 3, 3); gamma/beta: (Cout,)."""
    N, Cin, H, W = x_nchw.shape
    Cout = weight.shape[0]
    HW = H * W
    HWp = ((HW + 127) // 128) * 128            # lane-dense stores / full-width matmul

    kind = _device_kind()
    budget = _vmem_budget_bytes(kind)
    n_tc = _num_tensorcores(kind)

    # ---- Cout tiling --------------------------------------------------------
    prefer_256 = not ("v5e" in kind or "v5 lite" in kind or "v5lite" in kind)
    if prefer_256 and Cout % 256 == 0:
        ct = 256
    elif Cout % 128 == 0:
        ct = 128
    else:
        ct = Cout
    CT = Cout // ct
    if CT == 1 and n_tc >= 2 and ct % 16 == 0:  # give both TensorCores conv tiles
        ct //= 2
        CT = 2

    per_tap = Cin >= 128

    # ---- glue: flatten spatial (free reshape, NCHW stays NCHW) + bf16 cast ---
    x_flat = x_nchw.reshape(N, Cin, HW).astype(jnp.bfloat16)
    if HWp != HW:
        x_flat = jnp.pad(x_flat, ((0, 0), (0, 0), (0, HWp - HW)))
    # weight[o, c, i, j] -> w_mat[o, (i*3 + j)*Cin + c]
    w_mat = (jnp.transpose(weight, (0, 2, 3, 1))
             .reshape(Cout, 9 * Cin).astype(jnp.bfloat16))

    # ---- VMEM budgets (double-buffered blocks + in-kernel temps) -------------
    P = W + 1
    blk1 = (2 * Cin * HWp * 2 + 2 * ct * 9 * Cin * 2 + 2 * ct * HWp * 2
            + 4 * max(ct, 8) * 128 * 4 + 2 * CT * max(ct, 8) * 128 * 4)
    tmp1 = (Cin * (HWp + 2 * P) * 2
            + (0 if per_tap else 9 * Cin * HWp * 2)
            + 2 * ct * HWp * 4 + 8 * HWp * 4)
    vmem1 = int(min(max(blk1 + tmp1 + (4 << 20), 16 << 20), budget))
    cost1 = pl.CostEstimate(
        flops=int(2 * N * Cout * HW * 9 * Cin),
        transcendentals=0,
        bytes_accessed=int(N * Cin * HWp * 2 + Cout * 9 * Cin * 2
                           + N * Cout * HWp * 2 + 2 * Cout * 4))

    # --- pass 1: conv + batch statistics --------------------------------------
    conv_out, csum, csqsum = pl.pallas_call(
        functools.partial(conv_stats_kernel, W=W, HW_real=HW, per_tap=per_tap),
        out_shape=(
            jax.ShapeDtypeStruct((N, Cout, HWp), jnp.bfloat16),
            jax.ShapeDtypeStruct((Cout, 1), jnp.float32),
            jax.ShapeDtypeStruct((Cout, 1), jnp.float32),
        ),
        grid_spec=pltpu.PrefetchScalarGridSpec(
            num_scalar_prefetch=0,
            # Batch (stat reduction) outermost, Cout tiles innermost: the x block
            # index depends only on n, so x is DMA'd once per image, not per tile.
            grid=(N, CT),
            in_specs=[
                pl.BlockSpec((1, Cin, HWp), lambda n, c: (n, 0, 0)),
                pl.BlockSpec((ct, 9 * Cin), lambda n, c: (c, 0)),
            ],
            out_specs=[
                pl.BlockSpec((1, ct, HWp), lambda n, c: (n, c, 0)),
                pl.BlockSpec((ct, 1), lambda n, c: (c, 0)),
                pl.BlockSpec((ct, 1), lambda n, c: (c, 0)),
            ],
            scratch_shapes=[pltpu.VMEM((CT, ct, 1), jnp.float32),
                            pltpu.VMEM((CT, ct, 1), jnp.float32)],
        ),
        compiler_params=pltpu.CompilerParams(
            dimension_semantics=("arbitrary", "parallel"),
            vmem_limit_bytes=vmem1),
        cost_estimate=cost1,
    )(x_flat, w_mat)

    # --- BN affine terms from batch stats: O(Cout) work, plain JAX ------------
    count = float(N * HW)
    mean = csum / count
    var = csqsum / count - mean * mean           # biased variance (train-mode BN)
    inv = lax.rsqrt(var + EPS)
    scale = gamma.reshape(Cout, 1).astype(jnp.float32) * inv
    shift = beta.reshape(Cout, 1).astype(jnp.float32) - mean * scale

    # --- pass 2: scale/shift + ReLU (mem-bound FMA; bigger blocks) ------------
    ct2 = ct
    CT2 = Cout // ct2
    Nb = 1
    for d in range(N, 0, -1):
        if N % d == 0 and 2 * d * ct2 * HWp * (2 + 4) <= budget // 2:
            Nb = d
            break

    blk2 = 2 * Nb * ct2 * HWp * (2 + 4) + 4 * max(ct2, 8) * 128 * 4
    vmem2 = int(min(max(blk2 + (4 << 20), 16 << 20), budget))
    cost2 = pl.CostEstimate(
        flops=int(2 * N * Cout * HWp),
        transcendentals=0,
        bytes_accessed=int(N * Cout * HWp * (2 + 4) + 2 * Cout * 4))

    out_flat = pl.pallas_call(
        bn_relu_kernel,
        out_shape=jax.ShapeDtypeStruct((N, Cout, HWp), jnp.float32),
        grid_spec=pltpu.PrefetchScalarGridSpec(
            num_scalar_prefetch=0,
            grid=(N // Nb, CT2),
            in_specs=[
                pl.BlockSpec((Nb, ct2, HWp), lambda i, c: (i, c, 0)),
                pl.BlockSpec((ct2, 1), lambda i, c: (c, 0)),
                pl.BlockSpec((ct2, 1), lambda i, c: (c, 0)),
            ],
            out_specs=pl.BlockSpec((Nb, ct2, HWp), lambda i, c: (i, c, 0)),
        ),
        compiler_params=pltpu.CompilerParams(
            dimension_semantics=("parallel", "parallel"),
            vmem_limit_bytes=vmem2),
        cost_estimate=cost2,
    )(conv_out, scale, shift)

    if HWp != HW:
        out_flat = out_flat[:, :, :HW]
    return out_flat.reshape(N, Cout, H, W)       # free reshape, already NCHW


conv3_relu = jax.jit(conv3_relu)


# ----------------------------------------------------------------------------
# Pure-JAX reference (sanity check)
# ----------------------------------------------------------------------------
def reference(x_nchw, weight, gamma, beta):
    y = lax.conv_general_dilated(
        x_nchw, weight, window_strides=(1, 1), padding=((1, 1), (1, 1)),
        dimension_numbers=("NCHW", "OIHW", "NCHW"))
    mean = jnp.mean(y, axis=(0, 2, 3), keepdims=True)
    var = jnp.mean((y - mean) ** 2, axis=(0, 2, 3), keepdims=True)  # biased
    y = (y - mean) * lax.rsqrt(var + EPS)
    y = y * gamma.reshape(1, -1, 1, 1) + beta.reshape(1, -1, 1, 1)
    return jnp.maximum(y, 0.0)


if __name__ == "__main__":
    key = jax.random.PRNGKey(0)
    k_x, k_w, k_g, k_b = jax.random.split(key, 4)

    N, Cin, Cout, H, W = 2, 4, 8, 16, 16
    x = jax.random.normal(k_x, (N, Cin, H, W), jnp.float32)
    weight = jax.random.normal(k_w, (Cout, Cin, 3, 3), jnp.float32) * 0.1
    gamma = 1.0 + 0.1 * jax.random.normal(k_g, (Cout,), jnp.float32)
    beta = 0.1 * jax.random.normal(k_b, (Cout,), jnp.float32)

    out = conv3_relu(x, weight, gamma, beta)
    jax.block_until_ready(out)

    ref = reference(x, weight, gamma, beta)
    np.testing.assert_allclose(np.asarray(out), np.asarray(ref),
                               rtol=2e-2, atol=2e-2)  # bf16 conv vs f32 reference
    print("KERNEL_OK")
</pallas_src>

<mosaic_0001>
module attributes {stable_mosaic.version = 11 : i64} {
  func.func @bn_relu_kernel(%arg0: i32, %arg1: i32, %arg2: memref<2x8x256xbf16, #tpu.memory_space<vmem>>, %arg3: memref<8x1xf32, #tpu.memory_space<vmem>>, %arg4: memref<8x1xf32, #tpu.memory_space<vmem>>, %arg5: memref<2x8x256xf32, #tpu.memory_space<vmem>>) attributes {dimension_semantics = [#tpu.dimension_semantics<parallel>, #tpu.dimension_semantics<parallel>], iteration_bounds = array<i64: 1, 1>, scalar_prefetch = 0 : i64, scratch_operands = 0 : i64, tpu.core_type = #tpu.core_type<tc>, window_params = [{transform_indices = @transform_0, window_bounds = array<i64: 2, 8, 256>}, {transform_indices = @transform_1, window_bounds = array<i64: 8, 1>}, {transform_indices = @transform_2, window_bounds = array<i64: 8, 1>}, {transform_indices = @transform_3, window_bounds = array<i64: 2, 8, 256>}]} {
    %c0 = arith.constant 0 : index
    %c0_0 = arith.constant 0 : index
    %c0_1 = arith.constant 0 : index
    %0 = vector.load %arg2[%c0, %c0_0, %c0_1] : memref<2x8x256xbf16, #tpu.memory_space<vmem>>, vector<2x8x256xbf16>
    %1 = arith.extf %0 : vector<2x8x256xbf16> to vector<2x8x256xf32>
    %c0_2 = arith.constant 0 : index
    %c0_3 = arith.constant 0 : index
    %2 = vector.load %arg3[%c0_2, %c0_3] : memref<8x1xf32, #tpu.memory_space<vmem>>, vector<8x1xf32>
    %3 = vector.shape_cast %2 : vector<8x1xf32> to vector<1x8x1xf32>
    %4 = vector.broadcast %3 : vector<1x8x1xf32> to vector<2x8x256xf32>
    %5 = arith.mulf %1, %4 : vector<2x8x256xf32>
    %c0_4 = arith.constant 0 : index
    %c0_5 = arith.constant 0 : index
    %6 = vector.load %arg4[%c0_4, %c0_5] : memref<8x1xf32, #tpu.memory_space<vmem>>, vector<8x1xf32>
    %7 = vector.shape_cast %6 : vector<8x1xf32> to vector<1x8x1xf32>
    %8 = vector.broadcast %7 : vector<1x8x1xf32> to vector<2x8x256xf32>
    %9 = arith.addf %5, %8 : vector<2x8x256xf32>
    %cst = arith.constant 0.000000e+00 : f32
    %10 = vector.broadcast %cst : f32 to vector<2x8x256xf32>
    %11 = arith.maximumf %9, %10 : vector<2x8x256xf32>
    %c0_6 = arith.constant 0 : index
    %c0_7 = arith.constant 0 : index
    %c0_8 = arith.constant 0 : index
    %12 = vector.load %arg5[%c0_6, %c0_7, %c0_8] : memref<2x8x256xf32, #tpu.memory_space<vmem>>, vector<2x8x256xf32>
    tpu.vector_store %arg5[%c0_6, %c0_7, %c0_8], %11 {strides = array<i32>} : memref<2x8x256xf32, #tpu.memory_space<vmem>>, vector<2x8x256xf32>,
    return
  }
  func.func @transform_0(%arg0: i32, %arg1: i32) -> (i32, i32, i32) {
    %c0_i32 = arith.constant 0 : i32
    %c0_i32_0 = arith.constant 0 : i32
    return %arg0, %arg1, %c0_i32 : i32, i32, i32
  }
  func.func @transform_1(%arg0: i32, %arg1: i32) -> (i32, i32) {
    %c0_i32 = arith.constant 0 : i32
    %c0_i32_0 = arith.constant 0 : i32
    return %arg1, %c0_i32 : i32, i32
  }
  func.func @transform_2(%arg0: i32, %arg1: i32) -> (i32, i32) {
    %c0_i32 = arith.constant 0 : i32
    %c0_i32_0 = arith.constant 0 : i32
    return %arg1, %c0_i32 : i32, i32
  }
  func.func @transform_3(%arg0: i32, %arg1: i32) -> (i32, i32, i32) {
    %c0_i32 = arith.constant 0 : i32
    %c0_i32_0 = arith.constant 0 : i32
    return %arg0, %arg1, %c0_i32 : i32, i32, i32
  }
}

module attributes {stable_mosaic.version = 11 : i64} {
  func.func @conv_stats_kernel(%arg0: i32, %arg1: i32, %arg2: memref<1x4x256xbf16, #tpu.memory_space<vmem>>, %arg3: memref<8x36xbf16, #tpu.memory_space<vmem>>, %arg4: memref<1x8x256xbf16, #tpu.memory_space<vmem>>, %arg5: memref<8x1xf32, #tpu.memory_space<vmem>>, %arg6: memref<8x1xf32, #tpu.memory_space<vmem>>, %arg7: memref<1x8x1xf32, #tpu.memory_space<vmem>>, %arg8: memref<1x8x1xf32, #tpu.memory_space<vmem>>) attributes {dimension_semantics = [#tpu.dimension_semantics<arbitrary>, #tpu.dimension_semantics<parallel>], iteration_bounds = array<i64: 2, 1>, scalar_prefetch = 0 : i64, scratch_operands = 2 : i64, tpu.core_type = #tpu.core_type<tc>, window_params = [{transform_indices = @transform_0, window_bounds = array<i64: 1, 4, 256>}, {transform_indices = @transform_1, window_bounds = array<i64: 8, 36>}, {transform_indices = @transform_2, window_bounds = array<i64: 1, 8, 256>}, {transform_indices = @transform_3, window_bounds = array<i64: 8, 1>}, {transform_indices = @transform_4, window_bounds = array<i64: 8, 1>}]} {
    %c0 = arith.constant 0 : index
    %c0_0 = arith.constant 0 : index
    %c0_1 = arith.constant 0 : index
    %0 = vector.load %arg2[%c0, %c0_0, %c0_1] : memref<1x4x256xbf16, #tpu.memory_space<vmem>>, vector<1x4x256xbf16>
    %1 = vector.shape_cast %0 : vector<1x4x256xbf16> to vector<4x256xbf16>
    %cst = arith.constant 0.000000e+00 : bf16
    %2 = vector.broadcast %cst : bf16 to vector<4x17xbf16>
    %3 = tpu.concatenate %2, %1, %2 in 1 : vector<4x17xbf16>, vector<4x256xbf16>, vector<4x17xbf16> -> vector<4x290xbf16>
    %4 = tpu.iota {dimensions = array<i32: 1>} : vector<1x256xi32>
    %c16_i32 = arith.constant 16 : i32
    %c0_i32 = arith.constant 0 : i32
    %5 = arith.cmpi eq, %c16_i32, %c0_i32 : i32
    %c1_i32 = arith.constant 1 : i32
    %6 = arith.select %5, %c1_i32, %c16_i32 : i32
    %7 = vector.broadcast %6 : i32 to vector<1x256xi32>
    %8 = arith.remsi %4, %7 : vector<1x256xi32>
    %c0_i32_2 = arith.constant 0 : i32
    %9 = vector.broadcast %c0_i32_2 : i32 to vector<1x256xi32>
    %10 = arith.cmpi ne, %8, %9 : vector<1x256xi32>
    %c0_i32_3 = arith.constant 0 : i32
    %11 = vector.broadcast %c0_i32_3 : i32 to vector<1x256xi32>
    %12 = arith.cmpi slt, %8, %11 : vector<1x256xi32>
    %c0_i32_4 = arith.constant 0 : i32
    %13 = arith.cmpi slt, %6, %c0_i32_4 : i32
    %14 = vector.broadcast %13 : i1 to vector<1x256xi1>
    %15 = vector.broadcast %14 : vector<1x256xi1> to vector<1x256xi1>
    %16 = arith.xori %12, %15 : vector<1x256xi1>
    %17 = arith.andi %16, %10 : vector<1x256xi1>
    %18 = vector.broadcast %6 : i32 to vector<1x256xi32>
    %19 = arith.addi %8, %18 : vector<1x256xi32>
    %20 = arith.select %17, %19, %8 : vector<1x256xi1>, vector<1x256xi32>
    %c0_i32_5 = arith.constant 0 : i32
    %21 = vector.broadcast %c0_i32_5 : i32 to vector<1x256xi32>
    %22 = arith.cmpi ne, %20, %21 : vector<1x256xi32>
    %23 = arith.extui %22 : vector<1x256xi1> to vector<1x256xi32>
    %24 = arith.sitofp %23 : vector<1x256xi32> to vector<1x256xf32>
    %25 = arith.truncf %24 : vector<1x256xf32> to vector<1x256xbf16>
    %c15_i32 = arith.constant 15 : i32
    %26 = vector.broadcast %c15_i32 : i32 to vector<1x256xi32>
    %27 = arith.cmpi ne, %20, %26 : vector<1x256xi32>
    %28 = arith.extui %27 : vector<1x256xi1> to vector<1x256xi32>
    %29 = arith.sitofp %28 : vector<1x256xi32> to vector<1x256xf32>
    %30 = arith.truncf %29 : vector<1x256xf32> to vector<1x256xbf16>
    %31 = vector.extract_strided_slice %3 {offsets = [0, 0], sizes = [4, 256], strides = [1, 1]} : vector<4x290xbf16> to vector<4x256xbf16>
    %32 = vector.broadcast %25 : vector<1x256xbf16> to vector<4x256xbf16>
    %33 = arith.mulf %31, %32 : vector<4x256xbf16>
    %34 = vector.extract_strided_slice %3 {offsets = [0, 1], sizes = [4, 256], strides = [1, 1]} : vector<4x290xbf16> to vector<4x256xbf16>
    %35 = vector.extract_strided_slice %3 {offsets = [0, 2], sizes = [4, 256], strides = [1, 1]} : vector<4x290xbf16> to vector<4x256xbf16>
    %36 = vector.broadcast %30 : vector<1x256xbf16> to vector<4x256xbf16>
    %37 = arith.mulf %35, %36 : vector<4x256xbf16>
    %38 = vector.extract_strided_slice %3 {offsets = [0, 16], sizes = [4, 256], strides = [1, 1]} : vector<4x290xbf16> to vector<4x256xbf16>
    %39 = vector.broadcast %25 : vector<1x256xbf16> to vector<4x256xbf16>
    %40 = arith.mulf %38, %39 : vector<4x256xbf16>
    %41 = vector.extract_strided_slice %3 {offsets = [0, 17], sizes = [4, 256], strides = [1, 1]} : vector<4x290xbf16> to vector<4x256xbf16>
    %42 = vector.extract_strided_slice %3 {offsets = [0, 18], sizes = [4, 256], strides = [1, 1]} : vector<4x290xbf16> to vector<4x256xbf16>
    %43 = vector.broadcast %30 : vector<1x256xbf16> to vector<4x256xbf16>
    %44 = arith.mulf %42, %43 : vector<4x256xbf16>
    %45 = vector.extract_strided_slice %3 {offsets = [0, 32], sizes = [4, 256], strides = [1, 1]} : vector<4x290xbf16> to vector<4x256xbf16>
    %46 = vector.broadcast %25 : vector<1x256xbf16> to vector<4x256xbf16>
    %47 = arith.mulf %45, %46 : vector<4x256xbf16>
    %48 = vector.extract_strided_slice %3 {offsets = [0, 33], sizes = [4, 256], strides = [1, 1]} : vector<4x290xbf16> to vector<4x256xbf16>
    %49 = vector.extract_strided_slice %3 {offsets = [0, 34], sizes = [4, 256], strides = [1, 1]} : vector<4x290xbf16> to vector<4x256xbf16>
    %50 = vector.broadcast %30 : vector<1x256xbf16> to vector<4x256xbf16>
    %51 = arith.mulf %49, %50 : vector<4x256xbf16>
    %52 = tpu.concatenate %33, %34, %37, %40, %41, %44, %47, %48, %51 in 0 : vector<4x256xbf16>, vector<4x256xbf16>, vector<4x256xbf16>, vector<4x256xbf16>, vector<4x256xbf16>, vector<4x256xbf16>, vector<4x256xbf16>, vector<4x256xbf16>, vector<4x256xbf16> -> vector<36x256xbf16>
    %c0_6 = arith.constant 0 : index
    %c0_7 = arith.constant 0 : index
    %53 = vector.load %arg3[%c0_6, %c0_7] : memref<8x36xbf16, #tpu.memory_space<vmem>>, vector<8x36xbf16>
    %cst_8 = arith.constant dense<0.000000e+00> : vector<8x256xf32>
    %54 = tpu.matmul %53, %52, %cst_8 {dimension_numbers = #tpu.dot_dimension_numbers<[1], [0], [0], [1], [0, 0, 1, 1], [], []>} : vector<8x36xbf16>, vector<36x256xbf16>, vector<8x256xf32> -> vector<8x256xf32>
    %55 = arith.truncf %54 : vector<8x256xf32> to vector<8x256xbf16>
    %c0_9 = arith.constant 0 : index
    %c0_10 = arith.constant 0 : index
    %c0_11 = arith.constant 0 : index
    %56 = vector.load %arg4[%c0_9, %c0_10, %c0_11] : memref<1x8x256xbf16, #tpu.memory_space<vmem>>, vector<1x8x256xbf16>
    %57 = vector.shape_cast %56 : vector<1x8x256xbf16> to vector<8x256xbf16>
    %58 = vector.shape_cast %55 : vector<8x256xbf16> to vector<1x8x256xbf16>
    tpu.vector_store %arg4[%c0_9, %c0_10, %c0_11], %58 {strides = array<i32>} : memref<1x8x256xbf16, #tpu.memory_space<vmem>>, vector<1x8x256xbf16>,
    %c0_i32_12 = arith.constant 0 : i32
    %59 = arith.cmpi eq, %arg0, %c0_i32_12 : i32
    %60 = arith.extui %59 : i1 to i32
    %c0_i32_13 = arith.constant 0 : i32
    %61 = arith.cmpi ne, %60, %c0_i32_13 : i32
    scf.if %61 {
      %cst_32 = arith.constant 0.000000e+00 : f32
      %91 = vector.broadcast %cst_32 : f32 to vector<8x1xf32>
      %92 = arith.index_cast %arg1 : i32 to index
      %c0_33 = arith.constant 0 : index
      %c0_34 = arith.constant 0 : index
      %93 = vector.load %arg7[%92, %c0_33, %c0_34] : memref<1x8x1xf32, #tpu.memory_space<vmem>>, vector<1x8x1xf32>
      %94 = vector.shape_cast %93 : vector<1x8x1xf32> to vector<8x1xf32>
      %95 = vector.shape_cast %91 : vector<8x1xf32> to vector<1x8x1xf32>
      tpu.vector_store %arg7[%92, %c0_33, %c0_34], %95 {strides = array<i32>} : memref<1x8x1xf32, #tpu.memory_space<vmem>>, vector<1x8x1xf32>,
      %cst_35 = arith.constant 0.000000e+00 : f32
      %96 = vector.broadcast %cst_35 : f32 to vector<8x1xf32>
      %97 = arith.index_cast %arg1 : i32 to index
      %c0_36 = arith.constant 0 : index
      %c0_37 = arith.constant 0 : index
      %98 = vector.load %arg8[%97, %c0_36, %c0_37] : memref<1x8x1xf32, #tpu.memory_space<vmem>>, vector<1x8x1xf32>
      %99 = vector.shape_cast %98 : vector<1x8x1xf32> to vector<8x1xf32>
      %100 = vector.shape_cast %96 : vector<8x1xf32> to vector<1x8x1xf32>
      tpu.vector_store %arg8[%97, %c0_36, %c0_37], %100 {strides = array<i32>} : memref<1x8x1xf32, #tpu.memory_space<vmem>>, vector<1x8x1xf32>,
    } else {
    }
    %62 = arith.index_cast %arg1 : i32 to index
    %c0_14 = arith.constant 0 : index
    %c0_15 = arith.constant 0 : index
    %63 = vector.load %arg7[%62, %c0_14, %c0_15] : memref<1x8x1xf32, #tpu.memory_space<vmem>>, vector<1x8x1xf32>
    %64 = vector.shape_cast %63 : vector<1x8x1xf32> to vector<8x1xf32>
    %cst_16 = arith.constant dense<0.000000e+00> : vector<8xf32>
    %65 = vector.multi_reduction <add>, %54, %cst_16 [1] : vector<8x256xf32> to vector<8xf32>
    %66 = vector.shape_cast %65 : vector<8xf32> to vector<8x1xf32>
    %67 = arith.addf %64, %66 : vector<8x1xf32>
    %68 = arith.index_cast %arg1 : i32 to index
    %c0_17 = arith.constant 0 : index
    %c0_18 = arith.constant 0 : index
    %69 = vector.load %arg7[%68, %c0_17, %c0_18] : memref<1x8x1xf32, #tpu.memory_space<vmem>>, vector<1x8x1xf32>
    %70 = vector.shape_cast %69 : vector<1x8x1xf32> to vector<8x1xf32>
    %71 = vector.shape_cast %67 : vector<8x1xf32> to vector<1x8x1xf32>
    tpu.vector_store %arg7[%68, %c0_17, %c0_18], %71 {strides = array<i32>} : memref<1x8x1xf32, #tpu.memory_space<vmem>>, vector<1x8x1xf32>,
    %72 = arith.index_cast %arg1 : i32 to index
    %c0_19 = arith.constant 0 : index
    %c0_20 = arith.constant 0 : index
    %73 = vector.load %arg8[%72, %c0_19, %c0_20] : memref<1x8x1xf32, #tpu.memory_space<vmem>>, vector<1x8x1xf32>
    %74 = vector.shape_cast %73 : vector<1x8x1xf32> to vector<8x1xf32>
    %75 = arith.mulf %54, %54 : vector<8x256xf32>
    %cst_21 = arith.constant dense<0.000000e+00> : vector<8xf32>
    %76 = vector.multi_reduction <add>, %75, %cst_21 [1] : vector<8x256xf32> to vector<8xf32>
    %77 = vector.shape_cast %76 : vector<8xf32> to vector<8x1xf32>
    %78 = arith.addf %74, %77 : vector<8x1xf32>
    %79 = arith.index_cast %arg1 : i32 to index
    %c0_22 = arith.constant 0 : index
    %c0_23 = arith.constant 0 : index
    %80 = vector.load %arg8[%79, %c0_22, %c0_23] : memref<1x8x1xf32, #tpu.memory_space<vmem>>, vector<1x8x1xf32>
    %81 = vector.shape_cast %80 : vector<1x8x1xf32> to vector<8x1xf32>
    %82 = vector.shape_cast %78 : vector<8x1xf32> to vector<1x8x1xf32>
    tpu.vector_store %arg8[%79, %c0_22, %c0_23], %82 {strides = array<i32>} : memref<1x8x1xf32, #tpu.memory_space<vmem>>, vector<1x8x1xf32>,
    %83 = arith.index_cast %arg1 : i32 to index
    %c0_24 = arith.constant 0 : index
    %c0_25 = arith.constant 0 : index
    %84 = vector.load %arg7[%83, %c0_24, %c0_25] : memref<1x8x1xf32, #tpu.memory_space<vmem>>, vector<1x8x1xf32>
    %85 = vector.shape_cast %84 : vector<1x8x1xf32> to vector<8x1xf32>
    %c0_26 = arith.constant 0 : index
    %c0_27 = arith.constant 0 : index
    %86 = vector.load %arg5[%c0_26, %c0_27] : memref<8x1xf32, #tpu.memory_space<vmem>>, vector<8x1xf32>
    tpu.vector_store %arg5[%c0_26, %c0_27], %85 {strides = array<i32>} : memref<8x1xf32, #tpu.memory_space<vmem>>, vector<8x1xf32>,
    %87 = arith.index_cast %arg1 : i32 to index
    %c0_28 = arith.constant 0 : index
    %c0_29 = arith.constant 0 : index
    %88 = vector.load %arg8[%87, %c0_28, %c0_29] : memref<1x8x1xf32, #tpu.memory_space<vmem>>, vector<1x8x1xf32>
    %89 = vector.shape_cast %88 : vector<1x8x1xf32> to vector<8x1xf32>
    %c0_30 = arith.constant 0 : index
    %c0_31 = arith.constant 0 : index
    %90 = vector.load %arg6[%c0_30, %c0_31] : memref<8x1xf32, #tpu.memory_space<vmem>>, vector<8x1xf32>
    tpu.vector_store %arg6[%c0_30, %c0_31], %89 {strides = array<i32>} : memref<8x1xf32, #tpu.memory_space<vmem>>, vector<8x1xf32>,
    return
  }
  func.func @transform_0(%arg0: i32, %arg1: i32) -> (i32, i32, i32) {
    %c0_i32 = arith.constant 0 : i32
    %c0_i32_0 = arith.constant 0 : i32
    %c0_i32_1 = arith.constant 0 : i32
    return %arg0, %c0_i32, %c0_i32_0 : i32, i32, i32
  }
  func.func @transform_1(%arg0: i32, %arg1: i32) -> (i32, i32) {
    %c0_i32 = arith.constant 0 : i32
    %c0_i32_0 = arith.constant 0 : i32
    return %arg1, %c0_i32 : i32, i32
  }
  func.func @transform_2(%arg0: i32, %arg1: i32) -> (i32, i32, i32) {
    %c0_i32 = arith.constant 0 : i32
    %c0_i32_0 = arith.constant 0 : i32
    return %arg0, %arg1, %c0_i32 : i32, i32, i32
  }
  func.func @transform_3(%arg0: i32, %arg1: i32) -> (i32, i32) {
    %c0_i32 = arith.constant 0 : i32
    %c0_i32_0 = arith.constant 0 : i32
    return %arg1, %c0_i32 : i32, i32
  }
  func.func @transform_4(%arg0: i32, %arg1: i32) -> (i32, i32) {
    %c0_i32 = arith.constant 0 : i32
    %c0_i32_0 = arith.constant 0 : i32
    return %arg1, %c0_i32 : i32, i32
  }
}

</mosaic_0001>

<llo_original>
// kernel: conv3_relu.3
$region0: #{conv3_relu.3}
  #allocation0 [shape = 'u32[]', space=smem, size = 0x4, offset = 0x4, fixed_abs, tag = 'smem constant byte address 0x4 - core index']
  #allocation1 [shape = 'u32[144,128]{1,0:T(1,128)}', space=vmem, size = 0x12000, scoped, tag = 'internal scratch']
  %s0 = inlined_call_operand.vmem [shape: bf16[2,8,256], index: 0, kind: input, shape index: {}]
  %s1 = inlined_call_operand.vmem [shape: f32[8,1], index: 1, kind: input, shape index: {}]
  %s2 = inlined_call_operand.vmem [shape: f32[8,1], index: 2, kind: input, shape index: {}]
  %s3 = inlined_call_operand.vmem [shape: f32[2,8,256], index: 3, kind: output, shape index: {}]
  %s4 = sld [smem:[#allocation0]]
  $region22: #{conv3_relu.3} parent=0
    _
  %s6 = ssub.s32 1, %s4
  %s7 = scalar_select 0, %s6, %s4
  // Predicated region
  $region2: #{conv3_relu.3} parent=0 // pred_check
    _
  $region3: #{conv3_relu.3} parent=0 // pred_check_branch
    %9 = sbr.rel (0) target = $region5
  $region4: #{conv3_relu.3} parent=0 // pred_region
    _
  $region5: #{conv3_relu.3} parent=0 // pred_fallthru
    _
  // Predicated region
  $region6: #{conv3_relu.3} parent=0 // pred_check
    _
  $region7: #{conv3_relu.3} parent=0 // pred_check_branch
    %11 = sbr.rel (0) target = $region9
  $region8: #{conv3_relu.3} parent=0 // pred_region
    _
  $region9: #{conv3_relu.3} parent=0 // pred_fallthru
    _
  // Predicated region
  $region10: #{conv3_relu.3} parent=0 // pred_check
    _
  $region11: #{conv3_relu.3} parent=0 // pred_check_branch
    %13 = sbr.rel (0) target = $region13
  $region12: #{conv3_relu.3} parent=0 // pred_region
    _
  $region13: #{conv3_relu.3} parent=0 // pred_fallthru
    _
  %v14 = vld [vmem:[%s0] sm:$0xff]
  %v15 = vld [vmem:[%s0 + $0x8] sm:$0xff]
  %v16 = vunpack.c.l.bf16 %v14
  %v17 = vunpack.c.h.bf16 %v14
  %v18 = vunpack.c.l.bf16 %v15
  %v19 = vunpack.c.h.bf16 %v15
  %v20 = vld [vmem:[%s1] sm:$0xff]
  %22 = vset.pattern.permute.xlu0 0
  %23 = vperm.xlu0 %22, %v20
  %v24 = vpop.permute.xlu0 %23
  %v26 = vmul.f32 %v16, %v24
  %v27 = vmul.f32 %v17, %v24
  %v28 = vmul.f32 %v18, %v24
  %v29 = vmul.f32 %v19, %v24
  %v30 = vld [vmem:[%s2] sm:$0xff]
  %32 = vset.pattern.permute.xlu0 0
  %33 = vperm.xlu0 %32, %v30
  %v34 = vpop.permute.xlu0 %33
  %v36 = vadd.f32 %v26, %v34
  %v37 = vadd.f32 %v27, %v34
  %v38 = vadd.f32 %v28, %v34
  %v39 = vadd.f32 %v29, %v34
  %v40 = vmax.f32 %v36, 0.0
  %v41 = vmax.f32 %v37, 0.0
  %v42 = vmax.f32 %v38, 0.0
  %v43 = vmax.f32 %v39, 0.0
  %44 = vst [vmem:[%s3] sm:$0xff] %v40
  %45 = vst [vmem:[%s3 + $0x8] sm:$0xff] %v41
  %46 = vst [vmem:[%s3 + $0x10] sm:$0xff] %v42
  %47 = vst [vmem:[%s3 + $0x18] sm:$0xff] %v43
  // Predicated region
  $region14: #{conv3_relu.3} parent=0 // pred_check
    _
  $region15: #{conv3_relu.3} parent=0 // pred_check_branch
    %49 = sbr.rel (0) target = $region17
  $region16: #{conv3_relu.3} parent=0 // pred_region
    _
  $region17: #{conv3_relu.3} parent=0 // pred_fallthru
    _
  // Predicated region
  $region18: #{conv3_relu.3} parent=0 // pred_check
    _
  $region19: #{conv3_relu.3} parent=0 // pred_check_branch
    %51 = sbr.rel (0) target = $region21
  $region20: #{conv3_relu.3} parent=0 // pred_region
    _
  $region21: #{conv3_relu.3} parent=0 // pred_fallthru
    _

// kernel: conv3_relu.2
$region0: #{conv3_relu.2}
  #allocation0 [shape = 'u32[]', space=smem, size = 0x4, offset = 0x4, fixed_abs, tag = 'smem constant byte address 0x4 - core index']
  #allocation1 [shape = 'u32[144,128]{1,0:T(1,128)}', space=vmem, size = 0x12000, scoped, tag = 'internal scratch']
  #allocation2 [shape = 'f32[1,8,1]{2,1,0:T(8,128)}', space=vmem, size = 0x1000, scoped, tag = 'scratch operand']
  #allocation3 [shape = 'f32[1,8,1]{2,1,0:T(8,128)}', space=vmem, size = 0x1000, scoped, tag = 'scratch operand']
  %s0 = inlined_call_operand.vmem [shape: bf16[2,4,256], index: 0, kind: input, shape index: {}]
  %s1 = inlined_call_operand.vmem [shape: bf16[8,36], index: 1, kind: input, shape index: {}]
  %s2 = inlined_call_operand.vmem [shape: bf16[2,8,256], index: 2, kind: output, shape index: {0}]
  %s3 = inlined_call_operand.vmem [shape: f32[8,1], index: 3, kind: output, shape index: {1}]
  %s4 = inlined_call_operand.vmem [shape: f32[8,1], index: 4, kind: output, shape index: {2}]
  %5 = xla_tuple %s2, %s3, %s4
  %s6 = sld [smem:[#allocation0]]
  $region61: #{conv3_relu.2} parent=0
    _
  %s8 = ssub.s32 1, %s6
  %s9 = scalar_select 0, %s8, %s6
  loop: start=0, step=1, limit=4
  $region2: #{conv3_relu.2} parent=0 // loop_pre_header
    _
  $region3: #{conv3_relu.2} parent=0 // loop_header
    %s11 = sphi 0, %s15
    %p12 = scmp.ge.s32.totalorder %s11, 4
    %s18 = sphi 0, %s30
    %s19 = sphi 0, %s26
    %s20 = sphi 0, %s18
    %s21 = sphi 0, %s19
    %s22 = sphi 0, %s20
    %s23 = sphi 0, %s21
    %s33 = sphi 0, %s35
    %s36 = sphi 0, %s33
    %s37 = sphi 0, %s36
    %s53 = sphi 0, %s37
    %s59 = sphi 0, %s61
    %s62 = sphi 0, %s59
    %s63 = sphi 0, %s62
    %s79 = sphi 0, %s63
    %s87 = sphi 0, %s89
    %s90 = sphi 0, %s87
    %s91 = sphi 0, %s90
    %s107 = sphi 0, %s91
    %s113 = sphi 0, %s115
    %s116 = sphi 0, %s113
    %s117 = sphi 0, %s116
    %s133 = sphi 0, %s117
    %s139 = sphi 0, %s141
    %s142 = sphi 0, %s139
    %s143 = sphi 0, %s142
    %s159 = sphi 0, %s143
  $region4: #{conv3_relu.2} parent=0 // loop_header_branch
    %14 = sbr.rel (%p12) target = $region8
  $region5: #{conv3_relu.2} parent=0 // loop_body
    %s16 = ssub.s32 %s11, 1
    %s17 = ssub.s32 %s11, 2
    %s24 = sadd.s32 1, %s19
    %p25 = scmp.ge.s32.totalorder %s24, 1
    %s26 = scalar_select %p25, 0, %s24
    %s27 = sadd.s32 1, %s18
    %s28 = scalar_select %p25, %s27, %s18
    %p29 = scmp.ge.s32.totalorder %s28, 2
    %s30 = scalar_select %p29, 0, %s28
    %s31 = ssub.s32 %s18, %s30
    %p32 = scmp.eq.s32.totalorder %s31, 0
    %s34 = sadd.s32 %s33, 1
    %s35 = scalar_select %p32, %s33, %s34
    %p38 = pneg %p32
    %p39 = scmp.eq.s32.totalorder %s11, 1
    %p40 = por %p38, %p39
    %p41 = scmp.ne.s32.totalorder %s33, %s36
    %p42 = scmp.eq.s32.totalorder %s11, 0
    %p43 = por %p41, %p42
    %p44 = scmp.ne.s32.totalorder %s33, %s36
    %p45 = scmp.eq.s32.totalorder %s16, 1
    %p46 = por %p44, %p45
    %p47 = scmp.ne.s32.totalorder %s36, %s37
    %p48 = scmp.eq.s32.totalorder %s16, 0
    %p49 = por %p47, %p48
    %p50 = scmp.ne.s32.totalorder %s36, %s37
    %p51 = scmp.eq.s32.totalorder %s17, 1
    %p52 = por %p50, %p51
    %p54 = scmp.ne.s32.totalorder %s37, %s53
    %p55 = scmp.eq.s32.totalorder %s17, 0
    %p56 = por %p54, %p55
    %s57 = ssub.s32 %s19, %s26
    %p58 = scmp.eq.s32.totalorder %s57, 0
    %s60 = sadd.s32 %s59, 1
    %s61 = scalar_select %p58, %s59, %s60
    %p64 = pneg %p58
    %p65 = scmp.eq.s32.totalorder %s11, 1
    %p66 = por %p64, %p65
    %p67 = scmp.ne.s32.totalorder %s59, %s62
    %p68 = scmp.eq.s32.totalorder %s11, 0
    %p69 = por %p67, %p68
    %p70 = scmp.ne.s32.totalorder %s59, %s62
    %p71 = scmp.eq.s32.totalorder %s16, 1
    %p72 = por %p70, %p71
    %p73 = scmp.ne.s32.totalorder %s62, %s63
    %p74 = scmp.eq.s32.totalorder %s16, 0
    %p75 = por %p73, %p74
    %p76 = scmp.ne.s32.totalorder %s62, %s63
    %p77 = scmp.eq.s32.totalorder %s17, 1
    %p78 = por %p76, %p77
    %p80 = scmp.ne.s32.totalorder %s63, %s79
    %p81 = scmp.eq.s32.totalorder %s17, 0
    %p82 = por %p80, %p81
    %s83 = ssub.s32 %s18, %s30
    %s84 = ssub.s32 %s19, %s26
    %s85 = sor.u32 %s83, %s84
    %p86 = scmp.eq.s32.totalorder %s85, 0
    %s88 = sadd.s32 %s87, 1
    %s89 = scalar_select %p86, %s87, %s88
    %p92 = pneg %p86
    %p93 = scmp.eq.s32.totalorder %s11, 1
    %p94 = por %p92, %p93
    %p95 = scmp.ne.s32.totalorder %s87, %s90
    %p96 = scmp.eq.s32.totalorder %s11, 0
    %p97 = por %p95, %p96
    %p98 = scmp.ne.s32.totalorder %s87, %s90
    %p99 = scmp.eq.s32.totalorder %s16, 1
    %p100 = por %p98, %p99
    %p101 = scmp.ne.s32.totalorder %s90, %s91
    %p102 = scmp.eq.s32.totalorder %s16, 0
    %p103 = por %p101, %p102
    %p104 = scmp.ne.s32.totalorder %s90, %s91
    %p105 = scmp.eq.s32.totalorder %s17, 1
    %p106 = por %p104, %p105
    %p108 = scmp.ne.s32.totalorder %s91, %s107
    %p109 = scmp.eq.s32.totalorder %s17, 0
    %p110 = por %p108, %p109
    %s111 = ssub.s32 %s19, %s26
    %p112 = scmp.eq.s32.totalorder %s111, 0
    %s114 = sadd.s32 %s113, 1
    %s115 = scalar_select %p112, %s113, %s114
    %p118 = pneg %p112
    %p119 = scmp.eq.s32.totalorder %s11, 1
    %p120 = por %p118, %p119
    %p121 = scmp.ne.s32.totalorder %s113, %s116
    %p122 = scmp.eq.s32.totalorder %s11, 0
    %p123 = por %p121, %p122
    %p124 = scmp.ne.s32.totalorder %s113, %s116
    %p125 = scmp.eq.s32.totalorder %s16, 1
    %p126 = por %p124, %p125
    %p127 = scmp.ne.s32.totalorder %s116, %s117
    %p128 = scmp.eq.s32.totalorder %s16, 0
    %p129 = por %p127, %p128
    %p130 = scmp.ne.s32.totalorder %s116, %s117
    %p131 = scmp.eq.s32.totalorder %s17, 1
    %p132 = por %p130, %p131
    %p134 = scmp.ne.s32.totalorder %s117, %s133
    %p135 = scmp.eq.s32.totalorder %s17, 0
    %p136 = por %p134, %p135
    %s137 = ssub.s32 %s19, %s26
    %p138 = scmp.eq.s32.totalorder %s137, 0
    %s140 = sadd.s32 %s139, 1
    %s141 = scalar_select %p138, %s139, %s140
    %p144 = pneg %p138
    %p145 = scmp.eq.s32.totalorder %s11, 1
    %p146 = por %p144, %p145
    %p147 = scmp.ne.s32.totalorder %s139, %s142
    %p148 = scmp.eq.s32.totalorder %s11, 0
    %p149 = por %p147, %p148
    %p150 = scmp.ne.s32.totalorder %s139, %s142
    %p151 = scmp.eq.s32.totalorder %s16, 1
    %p152 = por %p150, %p151
    %p153 = scmp.ne.s32.totalorder %s142, %s143
    %p154 = scmp.eq.s32.totalorder %s16, 0
    %p155 = por %p153, %p154
    %p156 = scmp.ne.s32.totalorder %s142, %s143
    %p157 = scmp.eq.s32.totalorder %s17, 1
    %p158 = por %p156, %p157
    %p160 = scmp.ne.s32.totalorder %s143, %s159
    %p161 = scmp.eq.s32.totalorder %s17, 0
    %p162 = por %p160, %p161
    %p163 = scmp.le.s32.totalorder 1, %s11
    %p164 = scmp.lt.s32.totalorder %s11, 3
    %p165 = pnand %p163, %p164
    %p166 = pneg %p165
    // Predicated region
    $region9: #{conv3_relu.2} parent=5 // pred_check
      _
    $region10: #{conv3_relu.2} parent=5 // pred_check_branch
      %168 = sbr.rel (%p165) target = $region12
    $region11: #{conv3_relu.2} parent=5 // pred_region
      %s169 = ssub.s32 %s11, 1
      // Predicated region
      $region13: #{conv3_relu.2} parent=11 // pred_check
        %p170 = pneg %p75
      $region14: #{conv3_relu.2} parent=11 // pred_check_branch
        %172 = sbr.rel (%p170) target = $region16
      $region15: #{conv3_relu.2} parent=11 // pred_region
        %p173 = scmp.lt.s32.totalorder %s21, 0
        %s174 = scalar_select %p173, %s21, 0
        %s175 = smul.addr %s174, 4
        %s176 = scalar_lea.vmem %s1, %s175
      $region16: #{conv3_relu.2} parent=11 // pred_fallthru
        _
    $region12: #{conv3_relu.2} parent=5 // pred_fallthru
      _
    %p177 = scmp.lt.s32.totalorder %s11, 2
    // Predicated region
    $region17: #{conv3_relu.2} parent=5 // pred_check
      %p178 = pneg %p177
    $region18: #{conv3_relu.2} parent=5 // pred_check_branch
      %180 = sbr.rel (%p178) target = $region20
    $region19: #{conv3_relu.2} parent=5 // pred_region
      // Predicated region
      $region21: #{conv3_relu.2} parent=19 // pred_check
        %p181 = pneg %p43
      $region22: #{conv3_relu.2} parent=19 // pred_check_branch
        %183 = sbr.rel (%p181) target = $region24
      $region23: #{conv3_relu.2} parent=19 // pred_region
        %p184 = scmp.lt.s32.totalorder %s18, 1
        %s185 = scalar_select %p184, %s18, 1
        %s186 = smul.addr %s185, 2
        %s187 = smul.addr %s186, 2
        %s188 = scalar_lea.vmem %s0, %s187
      $region24: #{conv3_relu.2} parent=19 // pred_fallthru
        _
    $region20: #{conv3_relu.2} parent=5 // pred_fallthru
      _
    %p189 = scmp.le.s32.totalorder 1, %s11
    %p190 = scmp.lt.s32.totalorder %s11, 3
    %p191 = pnand %p189, %p190
    %p192 = pneg %p191
    // Predicated region
    $region25: #{conv3_relu.2} parent=5 // pred_check
      _
    $region26: #{conv3_relu.2} parent=5 // pred_check_branch
      %194 = sbr.rel (%p191) target = $region28
    $region27: #{conv3_relu.2} parent=5 // pred_region
      %s195 = ssub.s32 %s11, 1
      %p196 = scmp.lt.s32.totalorder %s20, 1
      %s197 = scalar_select %p196, %s20, 1
      %s198 = smul.addr %s197, 2
      %s199 = smul.addr %s198, 2
      %s200 = scalar_lea.vmem %s0, %s199
      %p201 = pneg %p49
      %p202 = pneg %p46
      %p203 = scmp.lt.s32.totalorder %s21, 0
      %s204 = scalar_select %p203, %s21, 0
      %s205 = smul.addr %s204, 4
      %s206 = scalar_lea.vmem %s1, %s205
      %p207 = pneg %p75
      %p208 = pneg %p72
      %p209 = pneg %p103
      %p210 = pneg %p100
      %p211 = scmp.lt.s32.totalorder %s20, 1
      %s212 = scalar_select %p211, %s20, 1
      %p213 = scmp.lt.s32.totalorder %s21, 0
      %s214 = scalar_select %p213, %s21, 0
      %s215 = smul.addr %s214, 2
      %s216 = smul.addr %s212, 2
      %s217 = sadd.s32 %s215, %s216
      %s218 = smul.addr %s217, 4
      %s219 = scalar_lea.vmem %s2, %s218
      %p220 = pneg %p129
      %p221 = pneg %p126
      %p222 = scmp.lt.s32.totalorder %s21, 0
      %s223 = scalar_select %p222, %s21, 0
      %s224 = smul.addr %s223, 8
      %s225 = scalar_lea.vmem %s3, %s224
      %p226 = pneg %p155
      %p227 = pneg %p152
      %p228 = scmp.lt.s32.totalorder %s21, 0
      %s229 = scalar_select %p228, %s21, 0
      %s230 = smul.addr %s229, 8
      %s231 = scalar_lea.vmem %s4, %s230
      %p232 = scmp.lt.s32.totalorder %s20, 1
      %s233 = scalar_select %p232, %s20, 1
      %s234 = smul.addr %s233, 2
      %s235 = smul.addr %s234, 2
      %s236 = scalar_lea.vmem %s0, %s235
      %p237 = scmp.lt.s32.totalorder %s21, 0
      %s238 = scalar_select %p237, %s21, 0
      %s239 = smul.addr %s238, 4
      %s240 = scalar_lea.vmem %s1, %s239
      %p241 = scmp.lt.s32.totalorder %s20, 1
      %s242 = scalar_select %p241, %s20, 1
      %p243 = scmp.lt.s32.totalorder %s21, 0
      %s244 = scalar_select %p243, %s21, 0
      %s245 = smul.addr %s244, 2
      %s246 = smul.addr %s242, 2
      %s247 = sadd.s32 %s245, %s246
      %s248 = smul.addr %s247, 4
      %s249 = scalar_lea.vmem %s2, %s248
      %p250 = scmp.lt.s32.totalorder %s21, 0
      %s251 = scalar_select %p250, %s21, 0
      %s252 = smul.addr %s251, 8
      %s253 = scalar_lea.vmem %s3, %s252
      %p254 = scmp.lt.s32.totalorder %s21, 0
      %s255 = scalar_select %p254, %s21, 0
      %s256 = smul.addr %s255, 8
      %s257 = scalar_lea.vmem %s4, %s256
      %v259 = vld [vmem:[%s236] sm:$0xf]
      %v262 = vunpack.c.l.s4 1983009808
      %v263 = vunpack.c.0.s8 %v262
      %v264 = vlaneseq
      %v265 = vshrl.u32 %v264, 7
      %v266 = vsub.s32 %v263, %v265
      %v267 = vrot.slane %v259, %v266
      %v268 = vcombine.high %v267, %v267
      %269 = vrot.lane.b32.xlu0 %v267, 17
      %v270 = vpop.permute.xlu0 %269
      %271 = vrot.lane.b32.xlu0 %v268, 17
      %v272 = vpop.permute.xlu0 %271
      %vm273 = vcmask 138240
      %v274 = vsel %vm273, %v270, %v272
      %vm276 = vcmask 138240
      %v279 = vsel %vm276, 0, %v270
      %v282 = vsel %vm276, %v272, 0
      %v284 = vlaneseq
      %v285 = vand.u32 %v284, 127
      %v286 = vadd.s32 %v285, 128
      %vm287 = vcmp.lt.s32.totalorder %v285, 0
      %v288 = vsub.s32 0, %v285
      %v289 = vsel %vm287, %v288, %v285
      %v290 = vshrl.u32 %v289, 4
      %v291 = vand.u32 %v289, 15
      %v292 = vsub.s32 0, %v291
      %v293 = vsel %vm287, %v292, %v291
      %vm294 = vcmp.lt.s32.totalorder %v286, 0
      %v295 = vsub.s32 0, %v286
      %v296 = vsel %vm294, %v295, %v286
      %v297 = vshrl.u32 %v296, 4
      %v298 = vand.u32 %v296, 15
      %v299 = vsub.s32 0, %v298
      %v300 = vsel %vm294, %v299, %v298
      %vm301 = vcmp.ne.s32.totalorder %v293, 0
      %vm302 = vcmp.ne.s32.totalorder %v300, 0
      %vm303 = vcmp.lt.s32.totalorder %v293, 0
      %vm304 = vcmp.lt.s32.totalorder %v300, 0
      %vm305 = vmand %vm303, %vm301
      %vm306 = vmand %vm304, %vm302
      %v307 = vadd.s32 %v293, 16
      %v308 = vadd.s32 %v300, 16
      %v309 = vsel %vm305, %v307, %v293
      %v310 = vsel %vm306, %v308, %v300
      %vm311 = vcmp.ne.s32.totalorder %v309, 0
      %vm312 = vcmp.ne.s32.totalorder %v310, 0
      %v313 = vsel %vm311, 1, 0
      %v314 = vsel %vm312, 1, 0
      %v315 = vcvt.s32.f32 %v313
      %v316 = vcvt.s32.f32 %v314
      %v317 = vpack.c.bf16 %v315, %v315
      %v318 = vpack.c.bf16 %v316, %v316
      %vm319 = vcmp.ne.s32.totalorder %v309, 15
      %vm320 = vcmp.ne.s32.totalorder %v310, 15
      %v321 = vsel %vm319, 1, 0
      %v322 = vsel %vm320, 1, 0
      %v323 = vcvt.s32.f32 %v321
      %v324 = vcvt.s32.f32 %v322
      %v325 = vpack.c.bf16 %v323, %v323
      %v326 = vpack.c.bf16 %v324, %v324
      %v327 = vmul.bf16 %v279, %v317
      %v328 = vmul.bf16 %v274, %v318
      %331 = vrot.lane.b32.xlu0 %v325, 2
      %v332 = vpop.permute.xlu0 %331
      %333 = vrot.lane.b32.xlu0 %v326, 2
      %v334 = vpop.permute.xlu0 %333
      %vm335 = vcmask 15360
      %v336 = vsel %vm335, %v332, %v334
      %v340 = vmul.bf16 %v279, %v332
      %v341 = vmul.bf16 %v274, %v336
      %v342 = vmul.bf16 %v282, %v334
      %345 = vrot.lane.b32.xlu0 %v317, 16
      %v346 = vpop.permute.xlu0 %345
      %347 = vrot.lane.b32.xlu0 %v318, 16
      %v348 = vpop.permute.xlu0 %347
      %vm349 = vcmask 130048
      %v350 = vsel %vm349, %v346, %v348
      %v354 = vmul.bf16 %v279, %v346
      %v355 = vmul.bf16 %v274, %v350
      %v356 = vmul.bf16 %v282, %v348
      %357 = vrot.lane.b32.xlu0 %v325, 18
      %v358 = vpop.permute.xlu0 %357
      %359 = vrot.lane.b32.xlu0 %v326, 18
      %v360 = vpop.permute.xlu0 %359
      %vm361 = vcmask 146432
      %v362 = vsel %vm361, %v358, %v360
      %v366 = vmul.bf16 %v279, %v358
      %v367 = vmul.bf16 %v274, %v362
      %v368 = vmul.bf16 %v282, %v360
      %369 = vrot.lane.b32.xlu0 %v317, 32
      %v370 = vpop.permute.xlu0 %369
      %371 = vrot.lane.b32.xlu0 %v318, 32
      %v372 = vpop.permute.xlu0 %371
      %vm373 = vcmask 261120
      %v374 = vsel %vm373, %v370, %v372
      %v378 = vmul.bf16 %v279, %v370
      %v379 = vmul.bf16 %v274, %v374
      %v380 = vmul.bf16 %v282, %v372
      %381 = vrot.lane.b32.xlu0 %v325, 34
      %v382 = vpop.permute.xlu0 %381
      %383 = vrot.lane.b32.xlu0 %v326, 34
      %v384 = vpop.permute.xlu0 %383
      %vm385 = vcmask 277504
      %v386 = vsel %vm385, %v382, %v384
      %v390 = vmul.bf16 %v279, %v382
      %v391 = vmul.bf16 %v274, %v386
      %v392 = vmul.bf16 %v282, %v384
      %v395 = vrot.slane %v279, 6
      %v396 = vrot.slane %v274, 6
      %v397 = vrot.slane %v282, 6
      %398 = vrot.lane.b32.xlu0 %v395, 127
      %v399 = vpop.permute.xlu0 %398
      %400 = vrot.lane.b32.xlu0 %v396, 127
      %v401 = vpop.permute.xlu0 %400
      %402 = vrot.lane.b32.xlu0 %v397, 127
      %v403 = vpop.permute.xlu0 %402
      %vm404 = vcmask 1039360
      %v405 = vsel %vm404, %v399, %v401
      %v406 = vsel %vm404, %v401, %v403
      %v410 = vrot.slane %v340, 4
      %v411 = vrot.slane %v341, 4
      %v412 = vrot.slane %v342, 4
      %413 = vrot.lane.b32.xlu0 %v410, 126
      %v414 = vpop.permute.xlu0 %413
      %415 = vrot.lane.b32.xlu0 %v411, 126
      %v416 = vpop.permute.xlu0 %415
      %417 = vrot.lane.b32.xlu0 %v412, 126
      %v418 = vpop.permute.xlu0 %417
      %vm419 = vcmask 1031168
      %v420 = vsel %vm419, %v414, %v416
      %v421 = vsel %vm419, %v416, %v418
      %v425 = vrot.slane %v354, 2
      %v426 = vrot.slane %v355, 2
      %v427 = vrot.slane %v356, 2
      %428 = vrot.lane.b32.xlu0 %v425, 112
      %v429 = vpop.permute.xlu0 %428
      %430 = vrot.lane.b32.xlu0 %v426, 112
      %v431 = vpop.permute.xlu0 %430
      %432 = vrot.lane.b32.xlu0 %v427, 112
      %v433 = vpop.permute.xlu0 %432
      %vm434 = vcmask 916480
      %v435 = vsel %vm434, %v429, %v431
      %v436 = vsel %vm434, %v431, %v433
      %437 = vrot.lane.b32.xlu0 %v279, 111
      %v438 = vpop.permute.xlu0 %437
      %439 = vrot.lane.b32.xlu0 %v274, 111
      %v440 = vpop.permute.xlu0 %439
      %441 = vrot.lane.b32.xlu0 %v282, 111
      %v442 = vpop.permute.xlu0 %441
      %vm443 = vcmask 908288
      %v444 = vsel %vm443, %v438, %v440
      %v445 = vsel %vm443, %v440, %v442
      %v449 = vrot.slane %v366, 6
      %v450 = vrot.slane %v367, 6
      %v451 = vrot.slane %v368, 6
      %452 = vrot.lane.b32.xlu0 %v449, 110
      %v453 = vpop.permute.xlu0 %452
      %454 = vrot.lane.b32.xlu0 %v450, 110
      %v455 = vpop.permute.xlu0 %454
      %456 = vrot.lane.b32.xlu0 %v451, 110
      %v457 = vpop.permute.xlu0 %456
      %vm458 = vcmask 900096
      %v459 = vsel %vm458, %v453, %v455
      %v460 = vsel %vm458, %v455, %v457
      %v464 = vrot.slane %v378, 4
      %v465 = vrot.slane %v379, 4
      %v466 = vrot.slane %v380, 4
      %467 = vrot.lane.b32.xlu0 %v464, 96
      %v468 = vpop.permute.xlu0 %467
      %469 = vrot.lane.b32.xlu0 %v465, 96
      %v470 = vpop.permute.xlu0 %469
      %471 = vrot.lane.b32.xlu0 %v466, 96
      %v472 = vpop.permute.xlu0 %471
      %vm473 = vcmask 785408
      %v474 = vsel %vm473, %v468, %v470
      %v475 = vsel %vm473, %v470, %v472
      %v476 = vrot.slane %v279, 2
      %v477 = vrot.slane %v274, 2
      %v478 = vrot.slane %v282, 2
      %479 = vrot.lane.b32.xlu0 %v476, 95
      %v480 = vpop.permute.xlu0 %479
      %481 = vrot.lane.b32.xlu0 %v477, 95
      %v482 = vpop.permute.xlu0 %481
      %483 = vrot.lane.b32.xlu0 %v478, 95
      %v484 = vpop.permute.xlu0 %483
      %vm485 = vcmask 777216
      %v486 = vsel %vm485, %v480, %v482
      %v487 = vsel %vm485, %v482, %v484
      %491 = vrot.lane.b32.xlu0 %v390, 94
      %v492 = vpop.permute.xlu0 %491
      %493 = vrot.lane.b32.xlu0 %v391, 94
      %v494 = vpop.permute.xlu0 %493
      %495 = vrot.lane.b32.xlu0 %v392, 94
      %v496 = vpop.permute.xlu0 %495
      %vm497 = vcmask 769024
      %v498 = vsel %vm497, %v492, %v494
      %v499 = vsel %vm497, %v494, %v496
      %vm500 = vcmask 1041408
      %v503 = vsel %vm500, %v327, %v405
      %v506 = vsel %vm500, %v328, %v406
      %vm507 = vcmask 1043456
      %v509 = vsel %vm507, %v503, %v420
      %v511 = vsel %vm507, %v506, %v421
      %vm512 = vcmask 1045504
      %v514 = vsel %vm512, %v509, %v435
      %v517 = vsel %vm512, %v511, %v436
      %v521 = vsel %vm500, %v444, %v459
      %v524 = vsel %vm500, %v445, %v460
      %v526 = vsel %vm507, %v521, %v474
      %v528 = vsel %vm507, %v524, %v475
      %v530 = vsel %vm512, %v526, %v486
      %v533 = vsel %vm512, %v528, %v487
      %v535 = vld [vmem:[%s240] sm:$0xf]
      %vm536 = vcmask 293888
      %v538 = vsel %vm536, %v535, 0
      %v541 = vsel %vm500, %v498, 0
      %v544 = vsel %vm500, %v499, 0
      %546 = vmatprep.subr.bf16.mxu0 0
      %547 = vmatpush1.bf16.msra.mxu0 0
      %548 = vmatprep.subr.bf16.mxu0 0
      %549 = vmatpush1.bf16.msra.mxu0 0
      %550 = vmatprep.subr.bf16.mxu0 0
      %551 = vmatpush1.bf16.msra.mxu0 0
      %552 = vmatprep.subr.bf16.mxu0 0
      %553 = vmatpush1.bf16.msra.mxu0 0
      %554 = vmatprep.subr.bf16.mxu0 0
      %555 = vmatpush1.bf16.msra.mxu0 0
      %556 = vmatprep.subr.bf16.mxu0 %v544
      %557 = vmatpush1.bf16.msra.mxu0 %v541
      %558 = vmatprep.subr.bf16.mxu0 %v533
      %559 = vmatpush1.bf16.msra.mxu0 %v530
      %560 = vmatprep.subr.bf16.mxu0 %v517
      %561 = vmatpush1.bf16.msra.mxu0 %v514
      %562 = vmatprep.subr.bf16.mxu0 0
      %563 = vmatpush2.bf16.msra.mxu0 0
      %564 = vmatprep.subr.bf16.mxu0 0
      %565 = vmatpush2.bf16.msra.mxu0 0
      %566 = vmatprep.subr.bf16.mxu0 0
      %567 = vmatpush2.bf16.msra.mxu0 0
      %568 = vmatprep.subr.bf16.mxu0 0
      %569 = vmatpush2.bf16.msra.mxu0 0
      %570 = vmatprep.subr.bf16.mxu0 0
      %571 = vmatpush2.bf16.msra.mxu0 0
      %572 = vmatprep.subr.bf16.mxu0 0
      %573 = vmatpush2.bf16.msra.mxu0 0
      %574 = vmatprep.subr.bf16.mxu0 0
      %575 = vmatpush2.bf16.msra.mxu0 0
      %576 = vmatprep.subr.bf16.mxu0 0
      %577 = vmatpush2.bf16.msra.mxu0 0
      %578 = vmatprep.mubr.bf16.mxu0 0
      %579 = vmatmul.mubr.bf16.gmra.mxu0 %v538
      %v580 = vpop.f32.mrf.mxu0
      %v581 = vadd.f32 0.0, %v580
      %v582 = vpop.f32.mrf.mxu0
      %v583 = vadd.f32 0.0, %v582
      %v584 = vpop.f32.mrf.mxu0
      %v585 = vpop.f32.mrf.mxu0
      %586 = vdwg.mxu0
      %v587 = vpack.c.bf16 %v581, %v581
      %v588 = vpack.c.bf16 %v583, %v583
      %v591 = vunpack.c.l.b16 %v587
      %v592 = vunpack.c.l.b16 %v588
      %v593 = vpack.c.b16 %v592, %v591
      %595 = vst [vmem:[%s249] sm:$0xff] %v593
      %p596 = scmp.eq.s32.totalorder %s20, 0
      // Predicated region
      $region29: #{conv3_relu.2} parent=27 // pred_check
        %p597 = pneg %p596
      $region30: #{conv3_relu.2} parent=27 // pred_check_branch
        %599 = sbr.rel (%p597) target = $region32
      $region31: #{conv3_relu.2} parent=27 // pred_region
        %s600 = smul.u32 %s21, 8
        %s601 = scalar_lea.vmem [#allocation2], %s600
        %vm602 = vcmask 7168
        %603 = vst.msk [vmem:[%s601] sm:$0xff] %vm602, 0.0
        %s604 = scalar_lea.vmem [#allocation3], %s600
        %605 = vst.msk [vmem:[%s604] sm:$0xff] %vm602, 0.0
      $region32: #{conv3_relu.2} parent=27 // pred_fallthru
        _
      %s606 = smul.u32 %s21, 8
      %s607 = scalar_lea.vmem [#allocation2], %s606
      %v608 = vld [vmem:[%s607] sm:$0xff]
      %v609 = vadd.f32 %v581, %v583
      %610 = vadd.xlane.f32.xlu0 %v609
      %v611 = vpop.xlane.xlu0 %610
      %v612 = vadd.f32 %v608, %v611
      %vm613 = vcmask 7168
      %614 = vst.msk [vmem:[%s607] sm:$0xff] %vm613, %v612
      %s615 = scalar_lea.vmem [#allocation3], %s606
      %v616 = vld [vmem:[%s615] sm:$0xff]
      %v617 = vmul.f32 %v581, %v581
      %v618 = vmul.f32 %v583, %v583
      %v619 = vadd.f32 %v617, %v618
      %620 = vadd.xlane.f32.xlu0 %v619
      %v621 = vpop.xlane.xlu0 %620
      %v622 = vadd.f32 %v616, %v621
      %623 = vst.msk [vmem:[%s615] sm:$0xff] %vm613, %v622
      %v624 = vld [vmem:[%s607] sm:$0xff]
      %625 = vst.msk [vmem:[%s253] sm:$0xff] %vm613, %v624
      %v626 = vld [vmem:[%s615] sm:$0xff]
      %627 = vst.msk [vmem:[%s257] sm:$0xff] %vm613, %v626
      %p628 = scmp.lt.s32.totalorder %s20, 1
      %s629 = scalar_select %p628, %s20, 1
      %p630 = scmp.lt.s32.totalorder %s21, 0
      %s631 = scalar_select %p630, %s21, 0
      %s632 = smul.addr %s631, 2
      %s633 = smul.addr %s629, 2
      %s634 = sadd.s32 %s632, %s633
      %s635 = smul.addr %s634, 4
      %s636 = scalar_lea.vmem %s2, %s635
      %p637 = scmp.lt.s32.totalorder %s21, 0
      %s638 = scalar_select %p637, %s21, 0
      %s639 = smul.addr %s638, 8
      %s640 = scalar_lea.vmem %s3, %s639
      %p641 = scmp.lt.s32.totalorder %s21, 0
      %s642 = scalar_select %p641, %s21, 0
      %s643 = smul.addr %s642, 8
      %s644 = scalar_lea.vmem %s4, %s643
      // Predicated region
      $region33: #{conv3_relu.2} parent=27 // pred_check
        %p645 = pneg %p100
      $region34: #{conv3_relu.2} parent=27 // pred_check_branch
        %647 = sbr.rel (%p645) target = $region36
      $region35: #{conv3_relu.2} parent=27 // pred_region
        _
      $region36: #{conv3_relu.2} parent=27 // pred_fallthru
        _
      // Predicated region
      $region37: #{conv3_relu.2} parent=27 // pred_check
        %p648 = pneg %p126
      $region38: #{conv3_relu.2} parent=27 // pred_check_branch
        %650 = sbr.rel (%p648) target = $region40
      $region39: #{conv3_relu.2} parent=27 // pred_region
        _
      $region40: #{conv3_relu.2} parent=27 // pred_fallthru
        _
      // Predicated region
      $region41: #{conv3_relu.2} parent=27 // pred_check
        %p651 = pneg %p152
      $region42: #{conv3_relu.2} parent=27 // pred_check_branch
        %653 = sbr.rel (%p651) target = $region44
      $region43: #{conv3_relu.2} parent=27 // pred_region
        _
      $region44: #{conv3_relu.2} parent=27 // pred_fallthru
        _
      // Predicated region
      $region45: #{conv3_relu.2} parent=27 // pred_check
        %p654 = pneg %p126
      $region46: #{conv3_relu.2} parent=27 // pred_check_branch
        %656 = sbr.rel (%p654) target = $region48
      $region47: #{conv3_relu.2} parent=27 // pred_region
        %p657 = scmp.lt.s32.totalorder %s21, 0
        %s658 = scalar_select %p657, %s21, 0
        %s659 = smul.addr %s658, 8
        %s660 = scalar_lea.vmem %s3, %s659
      $region48: #{conv3_relu.2} parent=27 // pred_fallthru
        _
      // Predicated region
      $region49: #{conv3_relu.2} parent=27 // pred_check
        %p661 = pneg %p152
      $region50: #{conv3_relu.2} parent=27 // pred_check_branch
        %663 = sbr.rel (%p661) target = $region52
      $region51: #{conv3_relu.2} parent=27 // pred_region
        %p664 = scmp.lt.s32.totalorder %s21, 0
        %s665 = scalar_select %p664, %s21, 0
        %s666 = smul.addr %s665, 8
        %s667 = scalar_lea.vmem %s4, %s666
      $region52: #{conv3_relu.2} parent=27 // pred_fallthru
        _
    $region28: #{conv3_relu.2} parent=5 // pred_fallthru
      _
    %p668 = scmp.le.s32.totalorder 2, %s11
    // Predicated region
    $region53: #{conv3_relu.2} parent=5 // pred_check
      %p669 = pneg %p668
    $region54: #{conv3_relu.2} parent=5 // pred_check_branch
      %671 = sbr.rel (%p669) target = $region56
    $region55: #{conv3_relu.2} parent=5 // pred_region
      %s672 = ssub.s32 %s11, 2
      // Predicated region
      $region57: #{conv3_relu.2} parent=55 // pred_check
        %p673 = pneg %p106
      $region58: #{conv3_relu.2} parent=55 // pred_check_branch
        %675 = sbr.rel (%p673) target = $region60
      $region59: #{conv3_relu.2} parent=55 // pred_region
        %p676 = scmp.lt.s32.totalorder %s22, 1
        %s677 = scalar_select %p676, %s22, 1
        %p678 = scmp.lt.s32.totalorder %s23, 0
        %s679 = scalar_select %p678, %s23, 0
        %s680 = smul.addr %s679, 2
        %s681 = smul.addr %s677, 2
        %s682 = sadd.s32 %s680, %s681
        %s683 = smul.addr %s682, 4
        %s684 = scalar_lea.vmem %s2, %s683
      $region60: #{conv3_relu.2} parent=55 // pred_fallthru
        _
    $region56: #{conv3_relu.2} parent=5 // pred_fallthru
      _
  $region6: #{conv3_relu.2} parent=0 // loop_footer
    %s15 = sadd.s32 1, %s11
  $region7: #{conv3_relu.2} parent=0 // loop_footer_branch
    %10 = sbr.rel target = $region3
  $region8: #{conv3_relu.2} parent=0 // loop_exit
    _

</llo_original>
